<compile_context>
chip_gen: v7x
topology: tpu7x:2x2x1
jax: 0.10.0
libtpu: 0.0.40
codegen_flags: <defaults>
</compile_context>

<pallas_src>
import jax
import jax.numpy as jnp
from jax.experimental import pallas as pl
from jax.experimental.pallas import tpu as pltpu  # noqa: F401  (TPU backend)

EPS = 1e-5

# ---- packed parameter slab layout (f32, shape (56, 16)) --------------------
#   rows  0:16  w1 (16,16)
#   rows 16:32  w2 (16,16)
#   row  32     gamma1   row 33  beta1
#   row  34     gamma2   row 35  beta2
#   rows 36:52  w3 (16,4) in cols 0:4 (rest zero)
#   row  52     b3 (4,)   in cols 0:4 (rest zero)
#   rows 53:56  zero pad (rows rounded up to a multiple of 8)
SLAB_ROWS = 56
SLAB_COLS = 16


def dqn_kernel(x_ref, p_ref, o_ref):
    x = x_ref[...]                       # (B,16) f32

    # -------- unpack parameters (static slices: zero-cost views) ------------
    w1 = p_ref[0:16, :]                  # (16,16)
    w2 = p_ref[16:32, :]                 # (16,16)
    g1, be1 = p_ref[32:33, :], p_ref[33:34, :]
    g2, be2 = p_ref[34:35, :], p_ref[35:36, :]
    w3 = p_ref[36:52, 0:4]               # (16,4)
    b3 = p_ref[52:53, 0:4]               # (1,4)

    # -------- Linear 1 (bias cancels under batch-stat BN) + BN + ReLU -------
    h = jnp.dot(x, w1, preferred_element_type=jnp.float32)          # (B,16)
    mean1 = jnp.mean(h, axis=0, keepdims=True)
    c1 = h - mean1
    var1 = jnp.mean(c1 * c1, axis=0, keepdims=True)                 # two-pass var
    h = jnp.maximum(c1 * (g1 * jax.lax.rsqrt(var1 + EPS)) + be1, 0.0)

    # -------- Linear 2 (no bias) + BN + ReLU ---------------------------------
    h = jnp.dot(h, w2, preferred_element_type=jnp.float32)          # (B,16)
    mean2 = jnp.mean(h, axis=0, keepdims=True)
    c2 = h - mean2
    var2 = jnp.mean(c2 * c2, axis=0, keepdims=True)
    h = jnp.maximum(c2 * (g2 * jax.lax.rsqrt(var2 + EPS)) + be2, 0.0)

    # -------- Final linear + softmax (exact) ---------------------------------
    logits = jnp.dot(h, w3, preferred_element_type=jnp.float32) + b3  # (B,4)
    m = jnp.max(logits, axis=-1, keepdims=True)
    e = jnp.exp(logits - m)
    o_ref[...] = (e / jnp.sum(e, axis=-1, keepdims=True)).astype(o_ref.dtype)


def pack_params(params):
    """One-time packing of all tiny parameter tensors into a single DMA slab.

    Call once at init (outside the jitted forward path)."""
    w1, g1, be1, w2, g2, be2, w3, b3 = params
    slab = jnp.zeros((SLAB_ROWS, SLAB_COLS), jnp.float32)
    slab = slab.at[0:16, :].set(w1)
    slab = slab.at[16:32, :].set(w2)
    slab = slab.at[32, :].set(g1.reshape(16))
    slab = slab.at[33, :].set(be1.reshape(16))
    slab = slab.at[34, :].set(g2.reshape(16))
    slab = slab.at[35, :].set(be2.reshape(16))
    slab = slab.at[36:52, 0:4].set(w3)
    slab = slab.at[52, 0:4].set(b3.reshape(4))
    return slab


def dqn_forward(x, p_slab):
    """x: (B,16) f32, B > 1.  p_slab: packed (56,16) f32 param slab.
    Returns softmax probabilities (B,4)."""
    B = x.shape[0]
    return pl.pallas_call(
        dqn_kernel,
        out_shape=jax.ShapeDtypeStruct((B, 4), jnp.float32),
        grid=(),
        in_specs=[
            pl.BlockSpec(x.shape, lambda: (0, 0)),
            pl.BlockSpec((SLAB_ROWS, SLAB_COLS), lambda: (0, 0)),
        ],
        out_specs=pl.BlockSpec((B, 4), lambda: (0, 0)),
    )(x, p_slab)


def reference_forward(x, params):
    """Pure-JAX f32 reference (training-mode BN; pre-BN biases provably cancel)."""
    w1, g1, be1, w2, g2, be2, w3, b3 = params

    def bn_relu(h, g, be):
        m = jnp.mean(h, axis=0, keepdims=True)
        v = jnp.mean((h - m) ** 2, axis=0, keepdims=True)
        return jnp.maximum((h - m) * jax.lax.rsqrt(v + EPS) * g + be, 0.0)

    h = bn_relu(x @ w1, g1, be1)
    h = bn_relu(h @ w2, g2, be2)
    return jax.nn.softmax(h @ w3 + b3, axis=-1)


def init_params(key):
    """Deterministic synthetic parameters (PyTorch-style init, weights stored
    as (in, out)).  b1/b2 are intentionally not created: they cancel under
    training-mode BatchNorm and are dropped from the kernel."""
    ks = jax.random.split(key, 4)

    def linear_w(k, fan_in, fan_out):
        bound = 1.0 / jnp.sqrt(fan_in)
        return jax.random.uniform(k, (fan_in, fan_out), jnp.float32, -bound, bound)

    w1 = linear_w(ks[0], 16, 16)
    w2 = linear_w(ks[1], 16, 16)
    w3 = linear_w(ks[2], 16, 4)
    b3 = jax.random.uniform(ks[3], (1, 4), jnp.float32,
                            -1.0 / jnp.sqrt(16.0), 1.0 / jnp.sqrt(16.0))
    # BatchNorm1d default init: gamma=1, beta=0 (kept as explicit params).
    g1 = jnp.ones((1, 16), jnp.float32)
    be1 = jnp.zeros((1, 16), jnp.float32)
    g2 = jnp.ones((1, 16), jnp.float32)
    be2 = jnp.zeros((1, 16), jnp.float32)
    return (w1, g1, be1, w2, g2, be2, w3, b3)


if __name__ == "__main__":
    key = jax.random.PRNGKey(0)
    k_params, k_x = jax.random.split(key)

    B = 8  # batch > 1 so training-mode BatchNorm statistics are well defined
    x = jax.random.normal(k_x, (B, 16), jnp.float32)
    params = init_params(k_params)

    # One-time packing; the jitted forward path is just the pallas_call.
    p_slab = jax.block_until_ready(pack_params(params))

    fwd = jax.jit(dqn_forward)
    out = jax.block_until_ready(fwd(x, p_slab))

    # sanity: shape, rows sum to 1, matches the pure-f32 reference tightly
    assert out.shape == (B, 4)
    assert jnp.allclose(jnp.sum(out, axis=-1), 1.0, atol=1e-5)
    ref = reference_forward(x, params)
    assert jnp.max(jnp.abs(out - ref)) < 1e-4

    print("KERNEL_OK")
</pallas_src>

<mosaic_0001>
module attributes {stable_mosaic.version = 11 : i64} {
  func.func @dqn_kernel(%arg0: memref<8x16xf32, #tpu.memory_space<vmem>>, %arg1: memref<56x16xf32, #tpu.memory_space<vmem>>, %arg2: memref<8x4xf32, #tpu.memory_space<vmem>>) attributes {dimension_semantics = [], scalar_prefetch = 0 : i64, scratch_operands = 0 : i64, tpu.core_type = #tpu.core_type<tc>} {
    %c0 = arith.constant 0 : index
    %c0_0 = arith.constant 0 : index
    %0 = vector.load %arg0[%c0, %c0_0] : memref<8x16xf32, #tpu.memory_space<vmem>>, vector<8x16xf32>
    %c0_1 = arith.constant 0 : index
    %c0_2 = arith.constant 0 : index
    %1 = vector.load %arg1[%c0_1, %c0_2] : memref<56x16xf32, #tpu.memory_space<vmem>>, vector<16x16xf32>
    %c16 = arith.constant 16 : index
    %c0_3 = arith.constant 0 : index
    %2 = vector.load %arg1[%c16, %c0_3] : memref<56x16xf32, #tpu.memory_space<vmem>>, vector<16x16xf32>
    %c32 = arith.constant 32 : index
    %c0_4 = arith.constant 0 : index
    %3 = vector.load %arg1[%c32, %c0_4] : memref<56x16xf32, #tpu.memory_space<vmem>>, vector<1x16xf32>
    %c33 = arith.constant 33 : index
    %c0_5 = arith.constant 0 : index
    %4 = vector.load %arg1[%c33, %c0_5] : memref<56x16xf32, #tpu.memory_space<vmem>>, vector<1x16xf32>
    %c34 = arith.constant 34 : index
    %c0_6 = arith.constant 0 : index
    %5 = vector.load %arg1[%c34, %c0_6] : memref<56x16xf32, #tpu.memory_space<vmem>>, vector<1x16xf32>
    %c35 = arith.constant 35 : index
    %c0_7 = arith.constant 0 : index
    %6 = vector.load %arg1[%c35, %c0_7] : memref<56x16xf32, #tpu.memory_space<vmem>>, vector<1x16xf32>
    %c36 = arith.constant 36 : index
    %c0_8 = arith.constant 0 : index
    %7 = vector.load %arg1[%c36, %c0_8] : memref<56x16xf32, #tpu.memory_space<vmem>>, vector<16x4xf32>
    %c52 = arith.constant 52 : index
    %c0_9 = arith.constant 0 : index
    %8 = vector.load %arg1[%c52, %c0_9] : memref<56x16xf32, #tpu.memory_space<vmem>>, vector<1x4xf32>
    %cst = arith.constant dense<0.000000e+00> : vector<8x16xf32>
    %9 = tpu.matmul %0, %1, %cst {dimension_numbers = #tpu.dot_dimension_numbers<[1], [0], [0], [1], [0, 0, 1, 1], [], []>} : vector<8x16xf32>, vector<16x16xf32>, vector<8x16xf32> -> vector<8x16xf32>
    %cst_10 = arith.constant dense<0.000000e+00> : vector<16xf32>
    %10 = vector.multi_reduction <add>, %9, %cst_10 [0] : vector<8x16xf32> to vector<16xf32>
    %11 = vector.shape_cast %10 : vector<16xf32> to vector<1x16xf32>
    %cst_11 = arith.constant 8.000000e+00 : f32
    %12 = vector.broadcast %cst_11 : f32 to vector<1x16xf32>
    %13 = arith.divf %11, %12 : vector<1x16xf32>
    %14 = vector.broadcast %13 : vector<1x16xf32> to vector<8x16xf32>
    %15 = arith.subf %9, %14 : vector<8x16xf32>
    %16 = arith.mulf %15, %15 : vector<8x16xf32>
    %cst_12 = arith.constant dense<0.000000e+00> : vector<16xf32>
    %17 = vector.multi_reduction <add>, %16, %cst_12 [0] : vector<8x16xf32> to vector<16xf32>
    %18 = vector.shape_cast %17 : vector<16xf32> to vector<1x16xf32>
    %cst_13 = arith.constant 8.000000e+00 : f32
    %19 = vector.broadcast %cst_13 : f32 to vector<1x16xf32>
    %20 = arith.divf %18, %19 : vector<1x16xf32>
    %cst_14 = arith.constant 9.99999974E-6 : f32
    %21 = vector.broadcast %cst_14 : f32 to vector<1x16xf32>
    %22 = arith.addf %20, %21 : vector<1x16xf32>
    %23 = math.rsqrt %22 : vector<1x16xf32>
    %24 = arith.mulf %3, %23 : vector<1x16xf32>
    %25 = vector.broadcast %24 : vector<1x16xf32> to vector<8x16xf32>
    %26 = arith.mulf %15, %25 : vector<8x16xf32>
    %27 = vector.broadcast %4 : vector<1x16xf32> to vector<8x16xf32>
    %28 = arith.addf %26, %27 : vector<8x16xf32>
    %cst_15 = arith.constant 0.000000e+00 : f32
    %29 = vector.broadcast %cst_15 : f32 to vector<8x16xf32>
    %30 = arith.maximumf %28, %29 : vector<8x16xf32>
    %cst_16 = arith.constant dense<0.000000e+00> : vector<8x16xf32>
    %31 = tpu.matmul %30, %2, %cst_16 {dimension_numbers = #tpu.dot_dimension_numbers<[1], [0], [0], [1], [0, 0, 1, 1], [], []>} : vector<8x16xf32>, vector<16x16xf32>, vector<8x16xf32> -> vector<8x16xf32>
    %cst_17 = arith.constant dense<0.000000e+00> : vector<16xf32>
    %32 = vector.multi_reduction <add>, %31, %cst_17 [0] : vector<8x16xf32> to vector<16xf32>
    %33 = vector.shape_cast %32 : vector<16xf32> to vector<1x16xf32>
    %cst_18 = arith.constant 8.000000e+00 : f32
    %34 = vector.broadcast %cst_18 : f32 to vector<1x16xf32>
    %35 = arith.divf %33, %34 : vector<1x16xf32>
    %36 = vector.broadcast %35 : vector<1x16xf32> to vector<8x16xf32>
    %37 = arith.subf %31, %36 : vector<8x16xf32>
    %38 = arith.mulf %37, %37 : vector<8x16xf32>
    %cst_19 = arith.constant dense<0.000000e+00> : vector<16xf32>
    %39 = vector.multi_reduction <add>, %38, %cst_19 [0] : vector<8x16xf32> to vector<16xf32>
    %40 = vector.shape_cast %39 : vector<16xf32> to vector<1x16xf32>
    %cst_20 = arith.constant 8.000000e+00 : f32
    %41 = vector.broadcast %cst_20 : f32 to vector<1x16xf32>
    %42 = arith.divf %40, %41 : vector<1x16xf32>
    %cst_21 = arith.constant 9.99999974E-6 : f32
    %43 = vector.broadcast %cst_21 : f32 to vector<1x16xf32>
    %44 = arith.addf %42, %43 : vector<1x16xf32>
    %45 = math.rsqrt %44 : vector<1x16xf32>
    %46 = arith.mulf %5, %45 : vector<1x16xf32>
    %47 = vector.broadcast %46 : vector<1x16xf32> to vector<8x16xf32>
    %48 = arith.mulf %37, %47 : vector<8x16xf32>
    %49 = vector.broadcast %6 : vector<1x16xf32> to vector<8x16xf32>
    %50 = arith.addf %48, %49 : vector<8x16xf32>
    %cst_22 = arith.constant 0.000000e+00 : f32
    %51 = vector.broadcast %cst_22 : f32 to vector<8x16xf32>
    %52 = arith.maximumf %50, %51 : vector<8x16xf32>
    %cst_23 = arith.constant dense<0.000000e+00> : vector<8x4xf32>
    %53 = tpu.matmul %52, %7, %cst_23 {dimension_numbers = #tpu.dot_dimension_numbers<[1], [0], [0], [1], [0, 0, 1, 1], [], []>} : vector<8x16xf32>, vector<16x4xf32>, vector<8x4xf32> -> vector<8x4xf32>
    %54 = vector.broadcast %8 : vector<1x4xf32> to vector<8x4xf32>
    %55 = arith.addf %53, %54 : vector<8x4xf32>
    %cst_24 = arith.constant dense<0xFF800000> : vector<8xf32>
    %56 = vector.multi_reduction <maximumf>, %55, %cst_24 [1] : vector<8x4xf32> to vector<8xf32>
    %57 = vector.shape_cast %56 : vector<8xf32> to vector<8x1xf32>
    %58 = vector.broadcast %57 : vector<8x1xf32> to vector<8x4xf32>
    %59 = arith.subf %55, %58 : vector<8x4xf32>
    %60 = math.exp %59 : vector<8x4xf32>
    %cst_25 = arith.constant dense<0.000000e+00> : vector<8xf32>
    %61 = vector.multi_reduction <add>, %60, %cst_25 [1] : vector<8x4xf32> to vector<8xf32>
    %62 = vector.shape_cast %61 : vector<8xf32> to vector<8x1xf32>
    %63 = vector.broadcast %62 : vector<8x1xf32> to vector<8x4xf32>
    %64 = arith.divf %60, %63 : vector<8x4xf32>
    %c0_26 = arith.constant 0 : index
    %c0_27 = arith.constant 0 : index
    %65 = vector.load %arg2[%c0_26, %c0_27] : memref<8x4xf32, #tpu.memory_space<vmem>>, vector<8x4xf32>
    tpu.vector_store %arg2[%c0_26, %c0_27], %64 {strides = array<i32>} : memref<8x4xf32, #tpu.memory_space<vmem>>, vector<8x4xf32>,
    return
  }
}

</mosaic_0001>

<llo_original>
// kernel: dqn_forward.1
$region0: #{dqn_forward.1}
  #allocation0 [shape = 'u32[]', space=smem, size = 0x4, offset = 0x4, fixed_abs, tag = 'smem constant byte address 0x4 - core index']
  #allocation1 [shape = 'u32[144,128]{1,0:T(1,128)}', space=vmem, size = 0x12000, scoped, tag = 'internal scratch']
  %s0 = inlined_call_operand.vmem [shape: f32[8,16], index: 0, kind: input, shape index: {}]
  %s1 = inlined_call_operand.vmem [shape: f32[56,16], index: 1, kind: input, shape index: {}]
  %s2 = inlined_call_operand.vmem [shape: f32[8,4], index: 2, kind: output, shape index: {}]
  %s3 = sld [smem:[#allocation0]]
  $region18: #{dqn_forward.1} parent=0
    _
  %s5 = ssub.s32 1, %s3
  %s6 = scalar_select 0, %s5, %s3
  // Predicated region
  $region2: #{dqn_forward.1} parent=0 // pred_check
    _
  $region3: #{dqn_forward.1} parent=0 // pred_check_branch
    %8 = sbr.rel (0) target = $region5
  $region4: #{dqn_forward.1} parent=0 // pred_region
    _
  $region5: #{dqn_forward.1} parent=0 // pred_fallthru
    _
  // Predicated region
  $region6: #{dqn_forward.1} parent=0 // pred_check
    _
  $region7: #{dqn_forward.1} parent=0 // pred_check_branch
    %10 = sbr.rel (0) target = $region9
  $region8: #{dqn_forward.1} parent=0 // pred_region
    _
  $region9: #{dqn_forward.1} parent=0 // pred_fallthru
    _
  %v11 = vld [vmem:[%s0] sm:$0xff]
  %v12 = vld [vmem:[%s1] sm:$0xff]
  %v13 = vld [vmem:[%s1 + $0x8] sm:$0xff]
  %v14 = vld [vmem:[%s1 + $0x10] sm:$0xff]
  %v15 = vld [vmem:[%s1 + $0x18] sm:$0xff]
  %v16 = vld [vmem:[%s1 + $0x20] sm:$0x1]
  %v17 = vld [vmem:[%s1 + $0x21] sm:$0x1]
  %v18 = vld [vmem:[%s1 + $0x22] sm:$0x1]
  %v19 = vld [vmem:[%s1 + $0x23] sm:$0x1]
  %v20 = vld [vmem:[%s1 + $0x24] sm:$0xff]
  %v21 = vld [vmem:[%s1 + $0x2c] sm:$0xff]
  %v22 = vld [vmem:[%s1 + $0x34] sm:$0x1]
  %vm23 = vcmask 130048
  %v25 = vsel %vm23, %v11, 0
  %27 = vmatprep.subr.mxu0 0.0
  %28 = vmatpush1.msra.mxu0 %v12
  %29 = vmatprep.subr.mxu0 0.0
  %30 = vmatpush1.msra.mxu0 %v13
  %31 = vmatprep.subr.mxu0 0.0
  %32 = vmatpush1.msra.mxu0 0.0
  %33 = vmatprep.subr.mxu0 0.0
  %34 = vmatpush1.msra.mxu0 0.0
  %35 = vmatprep.subr.mxu0 0.0
  %36 = vmatpush1.msra.mxu0 0.0
  %37 = vmatprep.subr.mxu0 0.0
  %38 = vmatpush1.msra.mxu0 0.0
  %39 = vmatprep.subr.mxu0 0.0
  %40 = vmatpush1.msra.mxu0 0.0
  %41 = vmatprep.subr.mxu0 0.0
  %42 = vmatpush1.msra.mxu0 0.0
  %43 = vmatprep.subr.mxu0 0.0
  %44 = vmatpush1.msra.mxu0 0.0
  %45 = vmatprep.subr.mxu0 0.0
  %46 = vmatpush1.msra.mxu0 0.0
  %47 = vmatprep.subr.mxu0 0.0
  %48 = vmatpush1.msra.mxu0 0.0
  %49 = vmatprep.subr.mxu0 0.0
  %50 = vmatpush1.msra.mxu0 0.0
  %51 = vmatprep.subr.mxu0 0.0
  %52 = vmatpush1.msra.mxu0 0.0
  %53 = vmatprep.subr.mxu0 0.0
  %54 = vmatpush1.msra.mxu0 0.0
  %55 = vmatprep.subr.mxu0 0.0
  %56 = vmatpush1.msra.mxu0 0.0
  %57 = vmatprep.subr.mxu0 0.0
  %58 = vmatpush1.msra.mxu0 0.0
  %59 = vmatprep.subr.mxu0 0.0
  %60 = vmatpush1.msra.mxu0 0.0
  %61 = vmatprep.subr.mxu0 0.0
  %62 = vmatpush1.msra.mxu0 0.0
  %63 = vmatprep.subr.mxu0 0.0
  %64 = vmatpush1.msra.mxu0 0.0
  %65 = vmatprep.subr.mxu0 0.0
  %66 = vmatpush1.msra.mxu0 0.0
  %67 = vmatprep.subr.mxu0 0.0
  %68 = vmatpush1.msra.mxu0 0.0
  %69 = vmatprep.subr.mxu0 0.0
  %70 = vmatpush1.msra.mxu0 0.0
  %71 = vmatprep.subr.mxu0 0.0
  %72 = vmatpush1.msra.mxu0 0.0
  %73 = vmatprep.subr.mxu0 0.0
  %74 = vmatpush1.msra.mxu0 0.0
  %75 = vmatprep.subr.mxu0 0.0
  %76 = vmatpush1.msra.mxu0 0.0
  %77 = vmatprep.subr.mxu0 0.0
  %78 = vmatpush1.msra.mxu0 0.0
  %79 = vmatprep.subr.mxu0 0.0
  %80 = vmatpush1.msra.mxu0 0.0
  %81 = vmatprep.subr.mxu0 0.0
  %82 = vmatpush1.msra.mxu0 0.0
  %83 = vmatprep.subr.mxu0 0.0
  %84 = vmatpush1.msra.mxu0 0.0
  %85 = vmatprep.subr.mxu0 0.0
  %86 = vmatpush1.msra.mxu0 0.0
  %87 = vmatprep.subr.mxu0 0.0
  %88 = vmatpush1.msra.mxu0 0.0
  %89 = vmatprep.subr.mxu0 0.0
  %90 = vmatpush1.msra.mxu0 0.0
  %91 = vmatprep.mubr.f32.mxu0 0.0
  %92 = vmatmul.mubr.f32.gmra.mrb[0].mxu0 %v25
  %v93 = vpop.f32.mrb[0].mxu0
  %v94 = vadd.f32 0.0, %v93
  %v95 = vpop.f32.mrb[0].mxu0
  %96 = vdwg.mxu0
  %v97 = vsel %vm23, %v94, 0.0
  %v98 = vrot.slane %v97, 4
  %v99 = vadd.f32 %v97, %v98
  %v100 = vrot.slane %v99, 2
  %v101 = vadd.f32 %v99, %v100
  %v102 = vrot.slane %v101, 1
  %v103 = vadd.f32 %v101, %v102
  %v104 = vrcp.pop 8.0
  %v105 = vmul.f32 %v103, %v104
  %v106 = vsub.f32 %v94, %v105
  %v107 = vmul.f32 %v106, %v106
  %v108 = vsel %vm23, %v107, 0.0
  %v109 = vrot.slane %v108, 4
  %v110 = vadd.f32 %v108, %v109
  %v111 = vrot.slane %v110, 2
  %v112 = vadd.f32 %v110, %v111
  %v113 = vrot.slane %v112, 1
  %v114 = vadd.f32 %v112, %v113
  %v115 = vmul.f32 %v114, %v104
  %v116 = vadd.f32 %v115, 1e-05
  %v117 = vrsqrt.pop %v116
  %v118 = vmul.f32 %v16, %v117
  %v119 = vlaneseq
  %v120 = vshrl.u32 %v119, 7
  %v121 = vsub.s32 0, %v120
  %v122 = vrot.slane %v118, %v121
  %v123 = vmul.f32 %v106, %v122
  %v124 = vlaneseq
  %v125 = vshrl.u32 %v124, 7
  %v126 = vsub.s32 0, %v125
  %v127 = vrot.slane %v17, %v126
  %v128 = vadd.f32 %v123, %v127
  %v129 = vmax.f32 %v128, 0.0
  %v131 = vsel %vm23, %v129, 0
  %133 = vmatprep.subr.mxu0 0.0
  %134 = vmatpush1.msra.mxu0 %v14
  %135 = vmatprep.subr.mxu0 0.0
  %136 = vmatpush1.msra.mxu0 %v15
  %137 = vmatprep.subr.mxu0 0.0
  %138 = vmatpush1.msra.mxu0 0.0
  %139 = vmatprep.subr.mxu0 0.0
  %140 = vmatpush1.msra.mxu0 0.0
  %141 = vmatprep.subr.mxu0 0.0
  %142 = vmatpush1.msra.mxu0 0.0
  %143 = vmatprep.subr.mxu0 0.0
  %144 = vmatpush1.msra.mxu0 0.0
  %145 = vmatprep.subr.mxu0 0.0
  %146 = vmatpush1.msra.mxu0 0.0
  %147 = vmatprep.subr.mxu0 0.0
  %148 = vmatpush1.msra.mxu0 0.0
  %149 = vmatprep.subr.mxu0 0.0
  %150 = vmatpush1.msra.mxu0 0.0
  %151 = vmatprep.subr.mxu0 0.0
  %152 = vmatpush1.msra.mxu0 0.0
  %153 = vmatprep.subr.mxu0 0.0
  %154 = vmatpush1.msra.mxu0 0.0
  %155 = vmatprep.subr.mxu0 0.0
  %156 = vmatpush1.msra.mxu0 0.0
  %157 = vmatprep.subr.mxu0 0.0
  %158 = vmatpush1.msra.mxu0 0.0
  %159 = vmatprep.subr.mxu0 0.0
  %160 = vmatpush1.msra.mxu0 0.0
  %161 = vmatprep.subr.mxu0 0.0
  %162 = vmatpush1.msra.mxu0 0.0
  %163 = vmatprep.subr.mxu0 0.0
  %164 = vmatpush1.msra.mxu0 0.0
  %165 = vmatprep.subr.mxu0 0.0
  %166 = vmatpush1.msra.mxu0 0.0
  %167 = vmatprep.subr.mxu0 0.0
  %168 = vmatpush1.msra.mxu0 0.0
  %169 = vmatprep.subr.mxu0 0.0
  %170 = vmatpush1.msra.mxu0 0.0
  %171 = vmatprep.subr.mxu0 0.0
  %172 = vmatpush1.msra.mxu0 0.0
  %173 = vmatprep.subr.mxu0 0.0
  %174 = vmatpush1.msra.mxu0 0.0
  %175 = vmatprep.subr.mxu0 0.0
  %176 = vmatpush1.msra.mxu0 0.0
  %177 = vmatprep.subr.mxu0 0.0
  %178 = vmatpush1.msra.mxu0 0.0
  %179 = vmatprep.subr.mxu0 0.0
  %180 = vmatpush1.msra.mxu0 0.0
  %181 = vmatprep.subr.mxu0 0.0
  %182 = vmatpush1.msra.mxu0 0.0
  %183 = vmatprep.subr.mxu0 0.0
  %184 = vmatpush1.msra.mxu0 0.0
  %185 = vmatprep.subr.mxu0 0.0
  %186 = vmatpush1.msra.mxu0 0.0
  %187 = vmatprep.subr.mxu0 0.0
  %188 = vmatpush1.msra.mxu0 0.0
  %189 = vmatprep.subr.mxu0 0.0
  %190 = vmatpush1.msra.mxu0 0.0
  %191 = vmatprep.subr.mxu0 0.0
  %192 = vmatpush1.msra.mxu0 0.0
  %193 = vmatprep.subr.mxu0 0.0
  %194 = vmatpush1.msra.mxu0 0.0
  %195 = vmatprep.subr.mxu0 0.0
  %196 = vmatpush1.msra.mxu0 0.0
  %197 = vmatprep.mubr.f32.mxu0 0.0
  %198 = vmatmul.mubr.f32.gmra.mrb[0].mxu0 %v131
  %v199 = vpop.f32.mrb[0].mxu0
  %v200 = vadd.f32 0.0, %v199
  %v201 = vpop.f32.mrb[0].mxu0
  %202 = vdwg.mxu0
  %v203 = vsel %vm23, %v200, 0.0
  %v204 = vrot.slane %v203, 4
  %v205 = vadd.f32 %v203, %v204
  %v206 = vrot.slane %v205, 2
  %v207 = vadd.f32 %v205, %v206
  %v208 = vrot.slane %v207, 1
  %v209 = vadd.f32 %v207, %v208
  %v210 = vmul.f32 %v209, %v104
  %v211 = vsub.f32 %v200, %v210
  %v212 = vmul.f32 %v211, %v211
  %v213 = vsel %vm23, %v212, 0.0
  %v214 = vrot.slane %v213, 4
  %v215 = vadd.f32 %v213, %v214
  %v216 = vrot.slane %v215, 2
  %v217 = vadd.f32 %v215, %v216
  %v218 = vrot.slane %v217, 1
  %v219 = vadd.f32 %v217, %v218
  %v220 = vmul.f32 %v219, %v104
  %v221 = vadd.f32 %v220, 1e-05
  %v222 = vrsqrt.pop %v221
  %v223 = vmul.f32 %v18, %v222
  %v224 = vlaneseq
  %v225 = vshrl.u32 %v224, 7
  %v226 = vsub.s32 0, %v225
  %v227 = vrot.slane %v223, %v226
  %v228 = vmul.f32 %v211, %v227
  %v229 = vlaneseq
  %v230 = vshrl.u32 %v229, 7
  %v231 = vsub.s32 0, %v230
  %v232 = vrot.slane %v19, %v231
  %v233 = vadd.f32 %v228, %v232
  %v234 = vmax.f32 %v233, 0.0
  %v235 = vlaneseq
  %v236 = vshrl.u32 %v235, 7
  %v237 = vsub.s32 0, %v236
  %v238 = vrot.slane %v22, %v237
  %v240 = vsel %vm23, %v234, 0
  %242 = vmatprep.subr.mxu0 0.0
  %243 = vmatpush1.msra.mxu0 %v20
  %244 = vmatprep.subr.mxu0 0.0
  %245 = vmatpush1.msra.mxu0 %v21
  %246 = vmatprep.subr.mxu0 0.0
  %247 = vmatpush1.msra.mxu0 0.0
  %248 = vmatprep.subr.mxu0 0.0
  %249 = vmatpush1.msra.mxu0 0.0
  %250 = vmatprep.subr.mxu0 0.0
  %251 = vmatpush1.msra.mxu0 0.0
  %252 = vmatprep.subr.mxu0 0.0
  %253 = vmatpush1.msra.mxu0 0.0
  %254 = vmatprep.subr.mxu0 0.0
  %255 = vmatpush1.msra.mxu0 0.0
  %256 = vmatprep.subr.mxu0 0.0
  %257 = vmatpush1.msra.mxu0 0.0
  %258 = vmatprep.subr.mxu0 0.0
  %259 = vmatpush1.msra.mxu0 0.0
  %260 = vmatprep.subr.mxu0 0.0
  %261 = vmatpush1.msra.mxu0 0.0
  %262 = vmatprep.subr.mxu0 0.0
  %263 = vmatpush1.msra.mxu0 0.0
  %264 = vmatprep.subr.mxu0 0.0
  %265 = vmatpush1.msra.mxu0 0.0
  %266 = vmatprep.subr.mxu0 0.0
  %267 = vmatpush1.msra.mxu0 0.0
  %268 = vmatprep.subr.mxu0 0.0
  %269 = vmatpush1.msra.mxu0 0.0
  %270 = vmatprep.subr.mxu0 0.0
  %271 = vmatpush1.msra.mxu0 0.0
  %272 = vmatprep.subr.mxu0 0.0
  %273 = vmatpush1.msra.mxu0 0.0
  %274 = vmatprep.subr.mxu0 0.0
  %275 = vmatpush1.msra.mxu0 0.0
  %276 = vmatprep.subr.mxu0 0.0
  %277 = vmatpush1.msra.mxu0 0.0
  %278 = vmatprep.subr.mxu0 0.0
  %279 = vmatpush1.msra.mxu0 0.0
  %280 = vmatprep.subr.mxu0 0.0
  %281 = vmatpush1.msra.mxu0 0.0
  %282 = vmatprep.subr.mxu0 0.0
  %283 = vmatpush1.msra.mxu0 0.0
  %284 = vmatprep.subr.mxu0 0.0
  %285 = vmatpush1.msra.mxu0 0.0
  %286 = vmatprep.subr.mxu0 0.0
  %287 = vmatpush1.msra.mxu0 0.0
  %288 = vmatprep.subr.mxu0 0.0
  %289 = vmatpush1.msra.mxu0 0.0
  %290 = vmatprep.subr.mxu0 0.0
  %291 = vmatpush1.msra.mxu0 0.0
  %292 = vmatprep.subr.mxu0 0.0
  %293 = vmatpush1.msra.mxu0 0.0
  %294 = vmatprep.subr.mxu0 0.0
  %295 = vmatpush1.msra.mxu0 0.0
  %296 = vmatprep.subr.mxu0 0.0
  %297 = vmatpush1.msra.mxu0 0.0
  %298 = vmatprep.subr.mxu0 0.0
  %299 = vmatpush1.msra.mxu0 0.0
  %300 = vmatprep.subr.mxu0 0.0
  %301 = vmatpush1.msra.mxu0 0.0
  %302 = vmatprep.subr.mxu0 0.0
  %303 = vmatpush1.msra.mxu0 0.0
  %304 = vmatprep.subr.mxu0 0.0
  %305 = vmatpush1.msra.mxu0 0.0
  %306 = vmatprep.mubr.f32.mxu0 0.0
  %307 = vmatmul.mubr.f32.gmra.mrb[0].mxu0 %v240
  %v308 = vpop.f32.mrb[0].mxu0
  %v309 = vadd.f32 %v238, %v308
  %v310 = vpop.f32.mrb[0].mxu0
  %311 = vdwg.mxu0
  %vm312 = vcmask 31744
  %v313 = vsel %vm312, %v309, -inf
  %314 = vmax.xlane.f32.xlu0 %v313
  %v315 = vpop.xlane.xlu0 %314
  %v316 = vsub.f32 %v309, %v315
  %v317 = vmul.f32 %v316, 1.442695
  %v318 = vpow.pop %v317
  %v319 = vsel %vm312, %v318, 0.0
  %320 = vadd.xlane.f32.xlu0 %v319
  %v321 = vpop.xlane.xlu0 %320
  %v322 = vrcp.pop %v321
  %v323 = vmul.f32 %v318, %v322
  %324 = vst.msk [vmem:[%s2] sm:$0xff] %vm312, %v323
  // Predicated region
  $region10: #{dqn_forward.1} parent=0 // pred_check
    _
  $region11: #{dqn_forward.1} parent=0 // pred_check_branch
    %326 = sbr.rel (0) target = $region13
  $region12: #{dqn_forward.1} parent=0 // pred_region
    _
  $region13: #{dqn_forward.1} parent=0 // pred_fallthru
    _
  // Predicated region
  $region14: #{dqn_forward.1} parent=0 // pred_check
    _
  $region15: #{dqn_forward.1} parent=0 // pred_check_branch
    %328 = sbr.rel (0) target = $region17
  $region16: #{dqn_forward.1} parent=0 // pred_region
    _
  $region17: #{dqn_forward.1} parent=0 // pred_fallthru
    _

</llo_original>
